<compile_context>
chip_gen: v5e
topology: v5e:2x2
jax: 0.10.0
libtpu: 0.0.40
codegen_flags: <defaults>
</compile_context>

<pallas_src>
import jax
import jax.numpy as jnp
from jax.experimental import pallas as pl
from jax.experimental.pallas import tpu as pltpu

LANE = 128


def _leaky_relu(x, slope=0.2):
    return jnp.where(x > 0, x, slope * x)


def _round_up(n, m):
    return ((n + m - 1) // m) * m


def _pad2(a, rows, cols, dtype):
    r, c = a.shape
    return jnp.pad(a, ((0, rows - r), (0, cols - c))).astype(dtype)


def discriminator_kernel(x_ref,
                         w1_ref, b1_ref,
                         w2_ref, b2_ref,
                         w3_ref, b3_ref,
                         w4_ref, b4_ref,
                         o_ref):
    # Whole MLP hot path in one kernel: 4 MXU matmuls (bf16 in, f32 acc) + f32
    # VPU/EUP epilogue (bias, leaky-relu, sigmoid). Output stored as bf16.
    x = x_ref[...].astype(jnp.bfloat16)  # f32 HBM read -> bf16 MXU input, cast in-kernel

    h = jnp.dot(x, w1_ref[...], preferred_element_type=jnp.float32) + b1_ref[...]
    h = _leaky_relu(h)
    # Dropout(0.1): identity in eval mode.
    # TODO(synk): training-mode dropout would use pltpu.prng_seed/prng_random_bits.

    h = jnp.dot(h.astype(jnp.bfloat16), w2_ref[...],
                preferred_element_type=jnp.float32) + b2_ref[...]
    h = _leaky_relu(h)

    h = jnp.dot(h.astype(jnp.bfloat16), w3_ref[...],
                preferred_element_type=jnp.float32) + b3_ref[...]
    h = _leaky_relu(h)

    h = jnp.dot(h.astype(jnp.bfloat16), w4_ref[...],
                preferred_element_type=jnp.float32) + b4_ref[...]
    # Lane-dense (TB, 128) bf16 store; only column 0 is meaningful (padded lanes
    # hold sigmoid(0)=0.5), sliced in the wrapper.
    o_ref[...] = jax.nn.sigmoid(h).astype(o_ref.dtype)


def _choose_batch_tile(B):
    """Batch tile: multiple of 16 (bf16 sublane packing), up to 2048 rows, and at
    least 2 grid steps once the batch is big enough so ("parallel",) can shard the
    grid across v7x's two TensorCores (no-op on v5e/v6e)."""
    b16 = _round_up(B, 16)
    if b16 <= 256:
        return b16
    return min(2048, _round_up(pl.cdiv(b16, 2), 16))


def discriminator_forward(x, params, return_padded_slab=False):
    """x: [B, latent_dim] float32. params: dict of (W, b) per layer, W as [in, out]."""
    B, latent_dim = x.shape
    w1, b1 = params["fc1"]
    w2, b2 = params["fc2"]
    w3, b3 = params["fc3"]
    w4, b4 = params["fc4"]

    # Lane-aligned hidden / output widths (layer-1 contraction stays at latent_dim).
    H1 = 256
    H2 = _round_up(64, LANE)   # 128
    H3 = _round_up(32, LANE)   # 128
    H4 = _round_up(1, LANE)    # 128 (lane-dense output slab)

    TB = _choose_batch_tile(B)
    grid = (pl.cdiv(B, TB),)   # partial last block handled by Pallas (OOB writes dropped)

    # Weights/biases are tiny -> one-time pad/cast in the wrapper is fine.
    # x is NOT padded or cast here (saves a full HBM pass over the batch).
    w1_p = w1.astype(jnp.bfloat16)                      # (latent_dim, 256)
    w2_p = _pad2(w2, H1, H2, jnp.bfloat16)
    w3_p = _pad2(w3, H2, H3, jnp.bfloat16)
    w4_p = _pad2(w4, H3, H4, jnp.bfloat16)
    b1_p = b1.reshape(1, -1).astype(jnp.float32)        # (1, 256)
    b2_p = _pad2(b2.reshape(1, -1), 1, H2, jnp.float32)
    b3_p = _pad2(b3.reshape(1, -1), 1, H3, jnp.float32)
    b4_p = _pad2(b4.reshape(1, -1), 1, H4, jnp.float32)

    def _resident(shape):
        # VMEM-resident operand (same block every grid step). Bind ndim at
        # definition time to avoid the late-binding-closure pitfall.
        nd = len(shape)
        return pl.BlockSpec(shape, lambda i, _nd=nd: (0,) * _nd,
                            memory_space=pltpu.VMEM)

    in_specs = [
        # x tile: last dim equals the full array dim, so no lane padding required.
        pl.BlockSpec((TB, latent_dim), lambda i: (i, 0), memory_space=pltpu.VMEM),
        _resident((latent_dim, H1)), _resident((1, H1)),
        _resident((H1, H2)), _resident((1, H2)),
        _resident((H2, H3)), _resident((1, H3)),
        _resident((H3, H4)), _resident((1, H4)),
    ]
    out_spec = pl.BlockSpec((TB, H4), lambda i: (i, 0), memory_space=pltpu.VMEM)

    flops = 2 * B * (latent_dim * H1 + H1 * H2 + H2 * H3 + H3 * H4)
    bytes_accessed = (
        x.size * 4
        + (w1_p.size + w2_p.size + w3_p.size + w4_p.size) * 2
        + (b1_p.size + b2_p.size + b3_p.size + b4_p.size) * 4
        + B * H4 * 2                                    # bf16 output slab
    )

    out_slab = pl.pallas_call(
        discriminator_kernel,
        out_shape=jax.ShapeDtypeStruct((B, H4), jnp.bfloat16),
        grid=grid,
        in_specs=in_specs,
        out_specs=out_spec,
        compiler_params=pltpu.CompilerParams(
            dimension_semantics=("parallel",)),
        cost_estimate=pl.CostEstimate(
            flops=flops, transcendentals=B * H4,
            bytes_accessed=bytes_accessed),
    )(x, w1_p, b1_p, w2_p, b2_p, w3_p, b3_p, w4_p, b4_p)

    if return_padded_slab:
        # (B, 128) bf16 slab; column 0 is the result, padded lanes are sigmoid(0)=0.5.
        # Consumers must slice column 0 and must NOT reduce over lanes.
        return out_slab
    return out_slab[:, :1].astype(jnp.float32)


def init_params(key, latent_dim):
    """Deterministic init mimicking nn.Linear (uniform +/- 1/sqrt(fan_in)); W as [in, out]."""
    dims = [(latent_dim, 256), (256, 64), (64, 32), (32, 1)]
    names = ["fc1", "fc2", "fc3", "fc4"]
    params = {}
    for name, (fan_in, fan_out) in zip(names, dims):
        key, kw, kb = jax.random.split(key, 3)
        bound = 1.0 / (fan_in ** 0.5)
        w = jax.random.uniform(kw, (fan_in, fan_out), jnp.float32, -bound, bound)
        b = jax.random.uniform(kb, (fan_out,), jnp.float32, -bound, bound)
        params[name] = (w, b)
    return params


def reference_forward(x, params):
    h = x
    for name in ["fc1", "fc2", "fc3"]:
        w, b = params[name]
        h = jnp.dot(h, w) + b
        h = jnp.where(h > 0, h, 0.2 * h)
    w, b = params["fc4"]
    return jax.nn.sigmoid(jnp.dot(h, w) + b)


if __name__ == "__main__":
    latent_dim = 64
    batch = 8

    key = jax.random.PRNGKey(0)
    key, kx = jax.random.split(key)
    x = jax.random.normal(kx, (batch, latent_dim), jnp.float32)
    params = init_params(key, latent_dim)

    out = discriminator_forward(x, params)
    out = jax.block_until_ready(out)
    ref = reference_forward(x, params)
    assert out.shape == (batch, 1)
    # bf16 MXU inputs + bf16 output slab (f32 accumulation/epilogue) -> looser
    # tolerance vs the f32 reference; drift compounds mildly across 4 layers.
    assert jnp.allclose(out, ref, atol=2e-2, rtol=2e-2), "mismatch vs reference (B=8)"

    # Second check: multi-step grid (2 steps -> exercises v7x megacore sharding)
    # with a partial last batch block.
    x2 = jax.random.normal(jax.random.PRNGKey(1), (600, latent_dim), jnp.float32)
    out2 = jax.block_until_ready(discriminator_forward(x2, params))
    ref2 = reference_forward(x2, params)
    assert out2.shape == (600, 1)
    assert jnp.allclose(out2, ref2, atol=3e-2, rtol=3e-2), "mismatch vs reference (B=600)"

    print("KERNEL_OK")
</pallas_src>

<mosaic_0001>
module attributes {stable_mosaic.version = 11 : i64} {
  func.func @discriminator_kernel(%arg0: i32, %arg1: memref<16x64xf32, #tpu.memory_space<vmem>>, %arg2: memref<64x256xbf16, #tpu.memory_space<vmem>>, %arg3: memref<1x256xf32, #tpu.memory_space<vmem>>, %arg4: memref<256x128xbf16, #tpu.memory_space<vmem>>, %arg5: memref<1x128xf32, #tpu.memory_space<vmem>>, %arg6: memref<128x128xbf16, #tpu.memory_space<vmem>>, %arg7: memref<1x128xf32, #tpu.memory_space<vmem>>, %arg8: memref<128x128xbf16, #tpu.memory_space<vmem>>, %arg9: memref<1x128xf32, #tpu.memory_space<vmem>>, %arg10: memref<16x128xbf16, #tpu.memory_space<vmem>>) attributes {dimension_semantics = [#tpu.dimension_semantics<parallel>], iteration_bounds = array<i64: 1>, scalar_prefetch = 0 : i64, scratch_operands = 0 : i64, tpu.core_type = #tpu.core_type<tc>, window_params = [{transform_indices = @transform_0, window_bounds = array<i64: 16, 64>}, {pipeline_mode = #tpu.pipeline_mode<synchronous>, transform_indices = @transform_1, window_bounds = array<i64: 64, 256>}, {pipeline_mode = #tpu.pipeline_mode<synchronous>, transform_indices = @transform_2, window_bounds = array<i64: 1, 256>}, {pipeline_mode = #tpu.pipeline_mode<synchronous>, transform_indices = @transform_3, window_bounds = array<i64: 256, 128>}, {pipeline_mode = #tpu.pipeline_mode<synchronous>, transform_indices = @transform_4, window_bounds = array<i64: 1, 128>}, {pipeline_mode = #tpu.pipeline_mode<synchronous>, transform_indices = @transform_5, window_bounds = array<i64: 128, 128>}, {pipeline_mode = #tpu.pipeline_mode<synchronous>, transform_indices = @transform_6, window_bounds = array<i64: 1, 128>}, {pipeline_mode = #tpu.pipeline_mode<synchronous>, transform_indices = @transform_7, window_bounds = array<i64: 128, 128>}, {pipeline_mode = #tpu.pipeline_mode<synchronous>, transform_indices = @transform_8, window_bounds = array<i64: 1, 128>}, {transform_indices = @transform_9, window_bounds = array<i64: 16, 128>}]} {
    %c0 = arith.constant 0 : index
    %c0_0 = arith.constant 0 : index
    %0 = vector.load %arg1[%c0, %c0_0] : memref<16x64xf32, #tpu.memory_space<vmem>>, vector<16x64xf32>
    %1 = arith.truncf %0 : vector<16x64xf32> to vector<16x64xbf16>
    %c0_1 = arith.constant 0 : index
    %c0_2 = arith.constant 0 : index
    %2 = vector.load %arg2[%c0_1, %c0_2] : memref<64x256xbf16, #tpu.memory_space<vmem>>, vector<64x256xbf16>
    %cst = arith.constant dense<0.000000e+00> : vector<16x256xf32>
    %3 = tpu.matmul %1, %2, %cst {dimension_numbers = #tpu.dot_dimension_numbers<[1], [0], [0], [1], [0, 0, 1, 1], [], []>} : vector<16x64xbf16>, vector<64x256xbf16>, vector<16x256xf32> -> vector<16x256xf32>
    %c0_3 = arith.constant 0 : index
    %c0_4 = arith.constant 0 : index
    %4 = vector.load %arg3[%c0_3, %c0_4] : memref<1x256xf32, #tpu.memory_space<vmem>>, vector<1x256xf32>
    %5 = vector.broadcast %4 : vector<1x256xf32> to vector<16x256xf32>
    %6 = arith.addf %3, %5 : vector<16x256xf32>
    %cst_5 = arith.constant 0.000000e+00 : f32
    %7 = vector.broadcast %cst_5 : f32 to vector<16x256xf32>
    %8 = arith.cmpf ogt, %6, %7 : vector<16x256xf32>
    %cst_6 = arith.constant 2.000000e-01 : f32
    %9 = vector.broadcast %cst_6 : f32 to vector<16x256xf32>
    %10 = arith.mulf %9, %6 : vector<16x256xf32>
    %11 = arith.select %8, %6, %10 : vector<16x256xi1>, vector<16x256xf32>
    %12 = arith.truncf %11 : vector<16x256xf32> to vector<16x256xbf16>
    %c0_7 = arith.constant 0 : index
    %c0_8 = arith.constant 0 : index
    %13 = vector.load %arg4[%c0_7, %c0_8] : memref<256x128xbf16, #tpu.memory_space<vmem>>, vector<256x128xbf16>
    %cst_9 = arith.constant dense<0.000000e+00> : vector<16x128xf32>
    %14 = tpu.matmul %12, %13, %cst_9 {dimension_numbers = #tpu.dot_dimension_numbers<[1], [0], [0], [1], [0, 0, 1, 1], [], []>} : vector<16x256xbf16>, vector<256x128xbf16>, vector<16x128xf32> -> vector<16x128xf32>
    %c0_10 = arith.constant 0 : index
    %c0_11 = arith.constant 0 : index
    %15 = vector.load %arg5[%c0_10, %c0_11] : memref<1x128xf32, #tpu.memory_space<vmem>>, vector<1x128xf32>
    %16 = vector.broadcast %15 : vector<1x128xf32> to vector<16x128xf32>
    %17 = arith.addf %14, %16 : vector<16x128xf32>
    %cst_12 = arith.constant 0.000000e+00 : f32
    %18 = vector.broadcast %cst_12 : f32 to vector<16x128xf32>
    %19 = arith.cmpf ogt, %17, %18 : vector<16x128xf32>
    %cst_13 = arith.constant 2.000000e-01 : f32
    %20 = vector.broadcast %cst_13 : f32 to vector<16x128xf32>
    %21 = arith.mulf %20, %17 : vector<16x128xf32>
    %22 = arith.select %19, %17, %21 : vector<16x128xi1>, vector<16x128xf32>
    %23 = arith.truncf %22 : vector<16x128xf32> to vector<16x128xbf16>
    %c0_14 = arith.constant 0 : index
    %c0_15 = arith.constant 0 : index
    %24 = vector.load %arg6[%c0_14, %c0_15] : memref<128x128xbf16, #tpu.memory_space<vmem>>, vector<128x128xbf16>
    %cst_16 = arith.constant dense<0.000000e+00> : vector<16x128xf32>
    %25 = tpu.matmul %23, %24, %cst_16 {dimension_numbers = #tpu.dot_dimension_numbers<[1], [0], [0], [1], [0, 0, 1, 1], [], []>} : vector<16x128xbf16>, vector<128x128xbf16>, vector<16x128xf32> -> vector<16x128xf32>
    %c0_17 = arith.constant 0 : index
    %c0_18 = arith.constant 0 : index
    %26 = vector.load %arg7[%c0_17, %c0_18] : memref<1x128xf32, #tpu.memory_space<vmem>>, vector<1x128xf32>
    %27 = vector.broadcast %26 : vector<1x128xf32> to vector<16x128xf32>
    %28 = arith.addf %25, %27 : vector<16x128xf32>
    %cst_19 = arith.constant 0.000000e+00 : f32
    %29 = vector.broadcast %cst_19 : f32 to vector<16x128xf32>
    %30 = arith.cmpf ogt, %28, %29 : vector<16x128xf32>
    %cst_20 = arith.constant 2.000000e-01 : f32
    %31 = vector.broadcast %cst_20 : f32 to vector<16x128xf32>
    %32 = arith.mulf %31, %28 : vector<16x128xf32>
    %33 = arith.select %30, %28, %32 : vector<16x128xi1>, vector<16x128xf32>
    %34 = arith.truncf %33 : vector<16x128xf32> to vector<16x128xbf16>
    %c0_21 = arith.constant 0 : index
    %c0_22 = arith.constant 0 : index
    %35 = vector.load %arg8[%c0_21, %c0_22] : memref<128x128xbf16, #tpu.memory_space<vmem>>, vector<128x128xbf16>
    %cst_23 = arith.constant dense<0.000000e+00> : vector<16x128xf32>
    %36 = tpu.matmul %34, %35, %cst_23 {dimension_numbers = #tpu.dot_dimension_numbers<[1], [0], [0], [1], [0, 0, 1, 1], [], []>} : vector<16x128xbf16>, vector<128x128xbf16>, vector<16x128xf32> -> vector<16x128xf32>
    %c0_24 = arith.constant 0 : index
    %c0_25 = arith.constant 0 : index
    %37 = vector.load %arg9[%c0_24, %c0_25] : memref<1x128xf32, #tpu.memory_space<vmem>>, vector<1x128xf32>
    %38 = vector.broadcast %37 : vector<1x128xf32> to vector<16x128xf32>
    %39 = arith.addf %36, %38 : vector<16x128xf32>
    %40 = arith.negf %39 : vector<16x128xf32>
    %41 = math.exp %40 : vector<16x128xf32>
    %cst_26 = arith.constant 1.000000e+00 : f32
    %42 = vector.broadcast %cst_26 : f32 to vector<16x128xf32>
    %43 = arith.addf %42, %41 : vector<16x128xf32>
    %44 = arith.divf %42, %43 : vector<16x128xf32>
    %45 = arith.truncf %44 : vector<16x128xf32> to vector<16x128xbf16>
    %c0_27 = arith.constant 0 : index
    %c0_28 = arith.constant 0 : index
    %46 = vector.load %arg10[%c0_27, %c0_28] : memref<16x128xbf16, #tpu.memory_space<vmem>>, vector<16x128xbf16>
    tpu.vector_store %arg10[%c0_27, %c0_28], %45 {strides = array<i32>} : memref<16x128xbf16, #tpu.memory_space<vmem>>, vector<16x128xbf16>,
    return
  }
  func.func @transform_0(%arg0: i32) -> (i32, i32) {
    %c0_i32 = arith.constant 0 : i32
    %c0_i32_0 = arith.constant 0 : i32
    return %arg0, %c0_i32 : i32, i32
  }
  func.func @transform_1(%arg0: i32) -> (i32, i32) {
    %c0_i32 = arith.constant 0 : i32
    %c0_i32_0 = arith.constant 0 : i32
    %c0_i32_1 = arith.constant 0 : i32
    return %c0_i32, %c0_i32_0 : i32, i32
  }
  func.func @transform_2(%arg0: i32) -> (i32, i32) {
    %c0_i32 = arith.constant 0 : i32
    %c0_i32_0 = arith.constant 0 : i32
    %c0_i32_1 = arith.constant 0 : i32
    return %c0_i32, %c0_i32_0 : i32, i32
  }
  func.func @transform_3(%arg0: i32) -> (i32, i32) {
    %c0_i32 = arith.constant 0 : i32
    %c0_i32_0 = arith.constant 0 : i32
    %c0_i32_1 = arith.constant 0 : i32
    return %c0_i32, %c0_i32_0 : i32, i32
  }
  func.func @transform_4(%arg0: i32) -> (i32, i32) {
    %c0_i32 = arith.constant 0 : i32
    %c0_i32_0 = arith.constant 0 : i32
    %c0_i32_1 = arith.constant 0 : i32
    return %c0_i32, %c0_i32_0 : i32, i32
  }
  func.func @transform_5(%arg0: i32) -> (i32, i32) {
    %c0_i32 = arith.constant 0 : i32
    %c0_i32_0 = arith.constant 0 : i32
    %c0_i32_1 = arith.constant 0 : i32
    return %c0_i32, %c0_i32_0 : i32, i32
  }
  func.func @transform_6(%arg0: i32) -> (i32, i32) {
    %c0_i32 = arith.constant 0 : i32
    %c0_i32_0 = arith.constant 0 : i32
    %c0_i32_1 = arith.constant 0 : i32
    return %c0_i32, %c0_i32_0 : i32, i32
  }
  func.func @transform_7(%arg0: i32) -> (i32, i32) {
    %c0_i32 = arith.constant 0 : i32
    %c0_i32_0 = arith.constant 0 : i32
    %c0_i32_1 = arith.constant 0 : i32
    return %c0_i32, %c0_i32_0 : i32, i32
  }
  func.func @transform_8(%arg0: i32) -> (i32, i32) {
    %c0_i32 = arith.constant 0 : i32
    %c0_i32_0 = arith.constant 0 : i32
    %c0_i32_1 = arith.constant 0 : i32
    return %c0_i32, %c0_i32_0 : i32, i32
  }
  func.func @transform_9(%arg0: i32) -> (i32, i32) {
    %c0_i32 = arith.constant 0 : i32
    %c0_i32_0 = arith.constant 0 : i32
    return %arg0, %c0_i32 : i32, i32
  }
}

</mosaic_0001>

<llo_original>
// kernel: tpu_custom_call.1
$region0: #{tpu_custom_call.1}
  #allocation0 [shape = 'u32[]', space=smem, size = 0x4, offset = 0x4, fixed_abs, tag = 'smem constant byte address 0x4 - core index']
  #allocation1 [shape = 'u32[72,128]{1,0:T(1,128)}', space=vmem, size = 0x9000, scoped, tag = 'internal scratch']
  %s0 = inlined_call_operand.hbm [shape: f32[8,64], index: 0, kind: input, shape index: {}]
  %s1 = inlined_call_operand.hbm [shape: bf16[64,256], index: 1, kind: input, shape index: {}]
  %s2 = inlined_call_operand.hbm [shape: f32[1,256], index: 2, kind: input, shape index: {}]
  %s3 = inlined_call_operand.hbm [shape: bf16[256,128], index: 3, kind: input, shape index: {}]
  %s4 = inlined_call_operand.vmem [shape: f32[1,128], index: 4, kind: input, shape index: {}]
  %s5 = inlined_call_operand.hbm [shape: bf16[128,128], index: 5, kind: input, shape index: {}]
  %s6 = inlined_call_operand.vmem [shape: f32[1,128], index: 6, kind: input, shape index: {}]
  %s7 = inlined_call_operand.hbm [shape: bf16[128,128], index: 7, kind: input, shape index: {}]
  %s8 = inlined_call_operand.vmem [shape: f32[1,128], index: 8, kind: input, shape index: {}]
  %s9 = inlined_call_operand.hbm [shape: bf16[8,128], index: 9, kind: output, shape index: {}]
  %s10 = sld [smem:[#allocation0]]
  $region70: #{tpu_custom_call.1} parent=0
    _
  %s12 = ssub.s32 1, %s10
  %s13 = scalar_select 0, %s12, %s10
  $region1: #{tpu_custom_call.1} parent=0
    #allocation2 [shape = 'u8[8192]{0}', space=vmem, size = 0x2000, scoped, tag = 'input window, operand 0, single buffered']
    #allocation3 [shape = 's32[1]{0}', space=sflag, size = 0x4, scoped, tag = 'scoped memory for tpu_custom_call.1']
    #allocation4 [shape = 's32[1]{0}', space=sflag, size = 0x4, scoped, tag = 'scoped memory for tpu_custom_call.1']
    #allocation5 [shape = 'u8[32768]{0}', space=vmem, size = 0x8000, scoped, tag = 'input window, operand 1, single buffered']
    #allocation6 [shape = 's32[1]{0}', space=sflag, size = 0x4, scoped, tag = 'scoped memory for tpu_custom_call.1']
    #allocation7 [shape = 'u8[1024]{0}', space=vmem, size = 0x400, scoped, tag = 'input window, operand 2, single buffered']
    #allocation8 [shape = 'u8[65536]{0}', space=vmem, size = 0x10000, scoped, tag = 'input window, operand 3, single buffered']
    #allocation9 [shape = 's32[1]{0}', space=sflag, size = 0x4, scoped, tag = 'scoped memory for tpu_custom_call.1']
    #allocation10 [shape = 'u8[32768]{0}', space=vmem, size = 0x8000, scoped, tag = 'input window, operand 5, single buffered']
    #allocation11 [shape = 'u8[32768]{0}', space=vmem, size = 0x8000, scoped, tag = 'input window, operand 7, single buffered']
    #allocation12 [shape = 's32[1]{0}', space=sflag, size = 0x4, scoped, tag = 'scoped memory for tpu_custom_call.1']
    #allocation13 [shape = 'u8[4096]{0}', space=vmem, size = 0x1000, scoped, tag = 'output window, operand 0, single buffered']
    %14 = vsyncpa [#allocation3], 0
    %15 = vsyncpa [#allocation6], 0
    %16 = vsyncpa [#allocation9], 0
    %17 = vsyncpa [#allocation12], 0
    %18 = vsyncpa [#allocation4], 0
    // Predicated region
    $region2: #{tpu_custom_call.1} parent=1 // pred_check
      _
    $region3: #{tpu_custom_call.1} parent=1 // pred_check_branch
      %20 = sbr.rel (0) target = $region5
    $region4: #{tpu_custom_call.1} parent=1 // pred_region
      %22 = vsyncadd [#allocation3], 128
      %s23 = sshll.u32 %s0, 4
      %s24 = int_to_ptr.hbm [resolvable:$true] %s23
      %s25 = sshll.u32 [#allocation2], 4
      %s26 = int_to_ptr.vmem [resolvable:$true] %s25
      %31 = dma.hbm_to_vmem [thread:$0]  %s24, 128, %s26, [#allocation3], 128, 128, 8
    $region5: #{tpu_custom_call.1} parent=1 // pred_fallthru
      _
    // Predicated region
    $region6: #{tpu_custom_call.1} parent=1 // pred_check
      _
    $region7: #{tpu_custom_call.1} parent=1 // pred_check_branch
      %33 = sbr.rel (0) target = $region9
    $region8: #{tpu_custom_call.1} parent=1 // pred_region
      %35 = vsyncadd [#allocation6], 0
      %s36 = sshll.u32 %s1, 4
      %s37 = int_to_ptr.hbm [resolvable:$true] %s36
      %s38 = sshll.u32 [#allocation5], 4
      %s39 = int_to_ptr.vmem [resolvable:$true] %s38
      %44 = dma.hbm_to_vmem [thread:$0]  %s37, 1024, %s39, [#allocation6], 128, 128, 8
    $region9: #{tpu_custom_call.1} parent=1 // pred_fallthru
      _
    // Predicated region
    $region10: #{tpu_custom_call.1} parent=1 // pred_check
      _
    $region11: #{tpu_custom_call.1} parent=1 // pred_check_branch
      %46 = sbr.rel (0) target = $region13
    $region12: #{tpu_custom_call.1} parent=1 // pred_region
      %48 = vsyncadd [#allocation6], 0
      %s50 = sshll.u32 %s2, 4
      %s51 = int_to_ptr.hbm [resolvable:$true] %s50
      %s52 = sshll.u32 [#allocation7], 4
      %s53 = int_to_ptr.vmem [resolvable:$true] %s52
      %55 = dma.hbm_to_vmem [thread:$0]  %s51, 32, %s53, [#allocation6]
    $region13: #{tpu_custom_call.1} parent=1 // pred_fallthru
      _
    // Predicated region
    $region14: #{tpu_custom_call.1} parent=1 // pred_check
      _
    $region15: #{tpu_custom_call.1} parent=1 // pred_check_branch
      %57 = sbr.rel (0) target = $region17
    $region16: #{tpu_custom_call.1} parent=1 // pred_region
      %59 = vsyncadd [#allocation9], 0
      %s60 = sshll.u32 %s3, 4
      %s61 = int_to_ptr.hbm [resolvable:$true] %s60
      %s62 = sshll.u32 [#allocation8], 4
      %s63 = int_to_ptr.vmem [resolvable:$true] %s62
      %68 = dma.hbm_to_vmem [thread:$0]  %s61, 2048, %s63, [#allocation9], 64, 64, 4
    $region17: #{tpu_custom_call.1} parent=1 // pred_fallthru
      _
    // Predicated region
    $region18: #{tpu_custom_call.1} parent=1 // pred_check
      _
    $region19: #{tpu_custom_call.1} parent=1 // pred_check_branch
      %70 = sbr.rel (0) target = $region21
    $region20: #{tpu_custom_call.1} parent=1 // pred_region
      _
    $region21: #{tpu_custom_call.1} parent=1 // pred_fallthru
      _
    // Predicated region
    $region22: #{tpu_custom_call.1} parent=1 // pred_check
      _
    $region23: #{tpu_custom_call.1} parent=1 // pred_check_branch
      %72 = sbr.rel (0) target = $region25
    $region24: #{tpu_custom_call.1} parent=1 // pred_region
      %74 = vsyncadd [#allocation9], 0
      %s75 = sshll.u32 %s5, 4
      %s76 = int_to_ptr.hbm [resolvable:$true] %s75
      %s77 = sshll.u32 [#allocation10], 4
      %s78 = int_to_ptr.vmem [resolvable:$true] %s77
      %83 = dma.hbm_to_vmem [thread:$0]  %s76, 1024, %s78, [#allocation9], 64, 64, 4
    $region25: #{tpu_custom_call.1} parent=1 // pred_fallthru
      _
    // Predicated region
    $region26: #{tpu_custom_call.1} parent=1 // pred_check
      _
    $region27: #{tpu_custom_call.1} parent=1 // pred_check_branch
      %85 = sbr.rel (0) target = $region29
    $region28: #{tpu_custom_call.1} parent=1 // pred_region
      _
    $region29: #{tpu_custom_call.1} parent=1 // pred_fallthru
      _
    // Predicated region
    $region30: #{tpu_custom_call.1} parent=1 // pred_check
      _
    $region31: #{tpu_custom_call.1} parent=1 // pred_check_branch
      %87 = sbr.rel (0) target = $region33
    $region32: #{tpu_custom_call.1} parent=1 // pred_region
      %89 = vsyncadd [#allocation12], 0
      %s90 = sshll.u32 %s7, 4
      %s91 = int_to_ptr.hbm [resolvable:$true] %s90
      %s92 = sshll.u32 [#allocation11], 4
      %s93 = int_to_ptr.vmem [resolvable:$true] %s92
      %98 = dma.hbm_to_vmem [thread:$0]  %s91, 1024, %s93, [#allocation12], 64, 64, 4
    $region33: #{tpu_custom_call.1} parent=1 // pred_fallthru
      _
    // Predicated region
    $region34: #{tpu_custom_call.1} parent=1 // pred_check
      _
    $region35: #{tpu_custom_call.1} parent=1 // pred_check_branch
      %100 = sbr.rel (0) target = $region37
    $region36: #{tpu_custom_call.1} parent=1 // pred_region
      _
    $region37: #{tpu_custom_call.1} parent=1 // pred_fallthru
      _
    // Predicated region
    $region38: #{tpu_custom_call.1} parent=1 // pred_check
      _
    $region39: #{tpu_custom_call.1} parent=1 // pred_check_branch
      %102 = sbr.rel (0) target = $region41
    $region40: #{tpu_custom_call.1} parent=1 // pred_region
      %104 = dma.done [#allocation3], 256
    $region41: #{tpu_custom_call.1} parent=1 // pred_fallthru
      _
    // Predicated region
    $region42: #{tpu_custom_call.1} parent=1 // pred_check
      _
    $region43: #{tpu_custom_call.1} parent=1 // pred_check_branch
      %106 = sbr.rel (0) target = $region45
    $region44: #{tpu_custom_call.1} parent=1 // pred_region
      %108 = dma.done [#allocation6], 1024
    $region45: #{tpu_custom_call.1} parent=1 // pred_fallthru
      _
    // Predicated region
    $region46: #{tpu_custom_call.1} parent=1 // pred_check
      _
    $region47: #{tpu_custom_call.1} parent=1 // pred_check_branch
      %110 = sbr.rel (0) target = $region49
    $region48: #{tpu_custom_call.1} parent=1 // pred_region
      %112 = dma.done [#allocation6], 32
    $region49: #{tpu_custom_call.1} parent=1 // pred_fallthru
      _
    // Predicated region
    $region50: #{tpu_custom_call.1} parent=1 // pred_check
      _
    $region51: #{tpu_custom_call.1} parent=1 // pred_check_branch
      %114 = sbr.rel (0) target = $region53
    $region52: #{tpu_custom_call.1} parent=1 // pred_region
      %116 = dma.done [#allocation9], 2048
    $region53: #{tpu_custom_call.1} parent=1 // pred_fallthru
      _
    // Predicated region
    $region54: #{tpu_custom_call.1} parent=1 // pred_check
      _
    $region55: #{tpu_custom_call.1} parent=1 // pred_check_branch
      %118 = sbr.rel (0) target = $region57
    $region56: #{tpu_custom_call.1} parent=1 // pred_region
      %120 = dma.done [#allocation9], 1024
    $region57: #{tpu_custom_call.1} parent=1 // pred_fallthru
      _
    // Predicated region
    $region58: #{tpu_custom_call.1} parent=1 // pred_check
      _
    $region59: #{tpu_custom_call.1} parent=1 // pred_check_branch
      %122 = sbr.rel (0) target = $region61
    $region60: #{tpu_custom_call.1} parent=1 // pred_region
      %124 = dma.done [#allocation12], 1024
    $region61: #{tpu_custom_call.1} parent=1 // pred_fallthru
      _
    %v126 = vld [vmem:[#allocation2] sm:$0xff]
    %v127 = vld [vmem:[#allocation2 + $0x8] sm:$0xff]
    %v128 = vpack.c.bf16 %v127, %v126
    %v129 = vld [vmem:[#allocation5] sm:$0xff]
    %v130 = vld [vmem:[#allocation5 + $0x8] sm:$0xff]
    %v131 = vld [vmem:[#allocation5 + $0x10] sm:$0xff]
    %v132 = vld [vmem:[#allocation5 + $0x18] sm:$0xff]
    %v133 = vld [vmem:[#allocation5 + $0x20] sm:$0xff]
    %v134 = vld [vmem:[#allocation5 + $0x28] sm:$0xff]
    %v135 = vld [vmem:[#allocation5 + $0x30] sm:$0xff]
    %v136 = vld [vmem:[#allocation5 + $0x38] sm:$0xff]
    %v137 = vld [vmem:[#allocation7] sm:$0x3]
    %v139 = vperm.slane %v137, 0
    %v140 = vperm.slane %v137, 1
    %v151 = vunpack.c.l.b16 %v129
    %v152 = vunpack.c.h.b16 %v129
    %v153 = vunpack.c.l.b16 %v130
    %v154 = vunpack.c.h.b16 %v130
    %v155 = vunpack.c.l.b16 %v131
    %v156 = vunpack.c.h.b16 %v131
    %v157 = vunpack.c.l.b16 %v132
    %v158 = vunpack.c.h.b16 %v132
    %v159 = vunpack.c.l.b16 %v133
    %v160 = vunpack.c.h.b16 %v133
    %v161 = vunpack.c.l.b16 %v134
    %v162 = vunpack.c.h.b16 %v134
    %v163 = vunpack.c.l.b16 %v135
    %v164 = vunpack.c.h.b16 %v135
    %v165 = vunpack.c.l.b16 %v136
    %v166 = vunpack.c.h.b16 %v136
    %v167 = vpack.c.b16 %v153, %v151
    %v168 = vpack.c.b16 %v154, %v152
    %v169 = vpack.c.b16 %v157, %v155
    %v170 = vpack.c.b16 %v158, %v156
    %v171 = vpack.c.b16 %v161, %v159
    %v172 = vpack.c.b16 %v162, %v160
    %v173 = vpack.c.b16 %v165, %v163
    %v174 = vpack.c.b16 %v166, %v164
    %vm183 = vcmask 523264
    %v185 = vsel %vm183, %v128, 0
    %187 = vmatpush.bf16.msra.mxu0 0
    %188 = vmatpush.bf16.msra.mxu0 0
    %189 = vmatpush.bf16.msra.mxu0 0
    %190 = vmatpush.bf16.msra.mxu0 0
    %191 = vmatpush.bf16.msra.mxu0 %v173
    %192 = vmatpush.bf16.msra.mxu0 %v171
    %193 = vmatpush.bf16.msra.mxu0 %v169
    %194 = vmatpush.bf16.msra.mxu0 %v167
    %195 = vmatmul.bf16.gmra.mxu0 %v185
    %v196 = vpop.f32.mrf.mxu0
    %v197 = vadd.f32 %v139, %v196
    %v198 = vpop.f32.mrf.mxu0
    %v199 = vadd.f32 %v139, %v198
    %200 = vdwg.mxu0
    %201 = vmatpush.bf16.msra.mxu0 0
    %202 = vmatpush.bf16.msra.mxu0 0
    %203 = vmatpush.bf16.msra.mxu0 0
    %204 = vmatpush.bf16.msra.mxu0 0
    %205 = vmatpush.bf16.msra.mxu0 %v174
    %206 = vmatpush.bf16.msra.mxu0 %v172
    %207 = vmatpush.bf16.msra.mxu0 %v170
    %208 = vmatpush.bf16.msra.mxu0 %v168
    %209 = vmatmul.bf16.gmra.mxu0 %v185
    %v210 = vpop.f32.mrf.mxu0
    %v211 = vadd.f32 %v140, %v210
    %v212 = vpop.f32.mrf.mxu0
    %v213 = vadd.f32 %v140, %v212
    %214 = vdwg.mxu0
    %vm215 = vcmp.gt.f32.partialorder %v197, 0.0
    %vm216 = vcmp.gt.f32.partialorder %v211, 0.0
    %vm217 = vcmp.gt.f32.partialorder %v199, 0.0
    %vm218 = vcmp.gt.f32.partialorder %v213, 0.0
    %v219 = vmul.f32 %v197, 0.2
    %v220 = vmul.f32 %v211, 0.2
    %v221 = vmul.f32 %v199, 0.2
    %v222 = vmul.f32 %v213, 0.2
    %v223 = vsel %vm215, %v197, %v219
    %v224 = vsel %vm216, %v211, %v220
    %v225 = vsel %vm217, %v199, %v221
    %v226 = vsel %vm218, %v213, %v222
    %v227 = vpack.c.bf16 %v225, %v223
    %v228 = vpack.c.bf16 %v226, %v224
    %v229 = vld [vmem:[#allocation8] sm:$0xf]
    %v230 = vld [vmem:[#allocation8 + $0x4] sm:$0xf]
    %v231 = vld [vmem:[#allocation8 + $0x8] sm:$0xf]
    %v232 = vld [vmem:[#allocation8 + $0xc] sm:$0xf]
    %v233 = vld [vmem:[#allocation8 + $0x10] sm:$0xf]
    %v234 = vld [vmem:[#allocation8 + $0x14] sm:$0xf]
    %v235 = vld [vmem:[#allocation8 + $0x18] sm:$0xf]
    %v236 = vld [vmem:[#allocation8 + $0x1c] sm:$0xf]
    %v237 = vld [vmem:[#allocation8 + $0x20] sm:$0xf]
    %v238 = vld [vmem:[#allocation8 + $0x24] sm:$0xf]
    %v239 = vld [vmem:[#allocation8 + $0x28] sm:$0xf]
    %v240 = vld [vmem:[#allocation8 + $0x2c] sm:$0xf]
    %v241 = vld [vmem:[#allocation8 + $0x30] sm:$0xf]
    %v242 = vld [vmem:[#allocation8 + $0x34] sm:$0xf]
    %v243 = vld [vmem:[#allocation8 + $0x38] sm:$0xf]
    %v244 = vld [vmem:[#allocation8 + $0x3c] sm:$0xf]
    %v245 = vld [vmem:[#allocation8 + $0x40] sm:$0xf]
    %v246 = vld [vmem:[#allocation8 + $0x44] sm:$0xf]
    %v247 = vld [vmem:[#allocation8 + $0x48] sm:$0xf]
    %v248 = vld [vmem:[#allocation8 + $0x4c] sm:$0xf]
    %v249 = vld [vmem:[#allocation8 + $0x50] sm:$0xf]
    %v250 = vld [vmem:[#allocation8 + $0x54] sm:$0xf]
    %v251 = vld [vmem:[#allocation8 + $0x58] sm:$0xf]
    %v252 = vld [vmem:[#allocation8 + $0x5c] sm:$0xf]
    %v253 = vld [vmem:[#allocation8 + $0x60] sm:$0xf]
    %v254 = vld [vmem:[#allocation8 + $0x64] sm:$0xf]
    %v255 = vld [vmem:[#allocation8 + $0x68] sm:$0xf]
    %v256 = vld [vmem:[#allocation8 + $0x6c] sm:$0xf]
    %v257 = vld [vmem:[#allocation8 + $0x70] sm:$0xf]
    %v258 = vld [vmem:[#allocation8 + $0x74] sm:$0xf]
    %v259 = vld [vmem:[#allocation8 + $0x78] sm:$0xf]
    %v260 = vld [vmem:[#allocation8 + $0x7c] sm:$0xf]
    %v261 = vld [vmem:[%s4] sm:$0x1]
    %v263 = vperm.slane %v261, 0
    %v297 = vunpack.c.l.b16 %v229
    %v298 = vunpack.c.l.b16 %v230
    %v299 = vunpack.c.l.b16 %v231
    %v300 = vunpack.c.l.b16 %v232
    %v301 = vunpack.c.l.b16 %v233
    %v302 = vunpack.c.l.b16 %v234
    %v303 = vunpack.c.l.b16 %v235
    %v304 = vunpack.c.l.b16 %v236
    %v305 = vunpack.c.l.b16 %v237
    %v306 = vunpack.c.l.b16 %v238
    %v307 = vunpack.c.l.b16 %v239
    %v308 = vunpack.c.l.b16 %v240
    %v309 = vunpack.c.l.b16 %v241
    %v310 = vunpack.c.l.b16 %v242
    %v311 = vunpack.c.l.b16 %v243
    %v312 = vunpack.c.l.b16 %v244
    %v313 = vunpack.c.l.b16 %v245
    %v314 = vunpack.c.l.b16 %v246
    %v315 = vunpack.c.l.b16 %v247
    %v316 = vunpack.c.l.b16 %v248
    %v317 = vunpack.c.l.b16 %v249
    %v318 = vunpack.c.l.b16 %v250
    %v319 = vunpack.c.l.b16 %v251
    %v320 = vunpack.c.l.b16 %v252
    %v321 = vunpack.c.l.b16 %v253
    %v322 = vunpack.c.l.b16 %v254
    %v323 = vunpack.c.l.b16 %v255
    %v324 = vunpack.c.l.b16 %v256
    %v325 = vunpack.c.l.b16 %v257
    %v326 = vunpack.c.l.b16 %v258
    %v327 = vunpack.c.l.b16 %v259
    %v328 = vunpack.c.l.b16 %v260
    %v329 = vpack.c.b16 %v298, %v297
    %v330 = vpack.c.b16 %v300, %v299
    %v331 = vpack.c.b16 %v302, %v301
    %v332 = vpack.c.b16 %v304, %v303
    %v333 = vpack.c.b16 %v306, %v305
    %v334 = vpack.c.b16 %v308, %v307
    %v335 = vpack.c.b16 %v310, %v309
    %v336 = vpack.c.b16 %v312, %v311
    %v337 = vpack.c.b16 %v314, %v313
    %v338 = vpack.c.b16 %v316, %v315
    %v339 = vpack.c.b16 %v318, %v317
    %v340 = vpack.c.b16 %v320, %v319
    %v341 = vpack.c.b16 %v322, %v321
    %v342 = vpack.c.b16 %v324, %v323
    %v343 = vpack.c.b16 %v326, %v325
    %v344 = vpack.c.b16 %v328, %v327
    %361 = vmatpush.bf16.msra.mxu0 %v336
    %362 = vmatpush.bf16.msra.mxu0 %v335
    %363 = vmatpush.bf16.msra.mxu0 %v334
    %364 = vmatpush.bf16.msra.mxu0 %v333
    %365 = vmatpush.bf16.msra.mxu0 %v332
    %366 = vmatpush.bf16.msra.mxu0 %v331
    %367 = vmatpush.bf16.msra.mxu0 %v330
    %368 = vmatpush.bf16.msra.mxu0 %v329
    %369 = vmatmul.bf16.gmra.mxu0 %v227
    %v370 = vpop.f32.mrf.mxu0
    %v371 = vadd.f32 %v263, %v370
    %v372 = vpop.f32.mrf.mxu0
    %v373 = vadd.f32 %v263, %v372
    %374 = vdwg.mxu0
    %375 = vmatpush.bf16.msra.mxu0 %v344
    %376 = vmatpush.bf16.msra.mxu0 %v343
    %377 = vmatpush.bf16.msra.mxu0 %v342
    %378 = vmatpush.bf16.msra.mxu0 %v341
    %379 = vmatpush.bf16.msra.mxu0 %v340
    %380 = vmatpush.bf16.msra.mxu0 %v339
    %381 = vmatpush.bf16.msra.mxu0 %v338
    %382 = vmatpush.bf16.msra.mxu0 %v337
    %383 = vmatmul.bf16.gmra.mxu0 %v228
    %v384 = vpop.f32.mrf.mxu0
    %v385 = vadd.f32 %v371, %v384
    %v386 = vpop.f32.mrf.mxu0
    %v387 = vadd.f32 %v373, %v386
    %388 = vdwg.mxu0
    %vm389 = vcmp.gt.f32.partialorder %v385, 0.0
    %vm390 = vcmp.gt.f32.partialorder %v387, 0.0
    %v391 = vmul.f32 %v385, 0.2
    %v392 = vmul.f32 %v387, 0.2
    %v393 = vsel %vm389, %v385, %v391
    %v394 = vsel %vm390, %v387, %v392
    %v395 = vpack.c.bf16 %v394, %v393
    %v396 = vld [vmem:[#allocation10] sm:$0xf]
    %v397 = vld [vmem:[#allocation10 + $0x4] sm:$0xf]
    %v398 = vld [vmem:[#allocation10 + $0x8] sm:$0xf]
    %v399 = vld [vmem:[#allocation10 + $0xc] sm:$0xf]
    %v400 = vld [vmem:[#allocation10 + $0x10] sm:$0xf]
    %v401 = vld [vmem:[#allocation10 + $0x14] sm:$0xf]
    %v402 = vld [vmem:[#allocation10 + $0x18] sm:$0xf]
    %v403 = vld [vmem:[#allocation10 + $0x1c] sm:$0xf]
    %v404 = vld [vmem:[#allocation10 + $0x20] sm:$0xf]
    %v405 = vld [vmem:[#allocation10 + $0x24] sm:$0xf]
    %v406 = vld [vmem:[#allocation10 + $0x28] sm:$0xf]
    %v407 = vld [vmem:[#allocation10 + $0x2c] sm:$0xf]
    %v408 = vld [vmem:[#allocation10 + $0x30] sm:$0xf]
    %v409 = vld [vmem:[#allocation10 + $0x34] sm:$0xf]
    %v410 = vld [vmem:[#allocation10 + $0x38] sm:$0xf]
    %v411 = vld [vmem:[#allocation10 + $0x3c] sm:$0xf]
    %v412 = vld [vmem:[%s6] sm:$0x1]
    %v414 = vperm.slane %v412, 0
    %v432 = vunpack.c.l.b16 %v396
    %v433 = vunpack.c.l.b16 %v397
    %v434 = vunpack.c.l.b16 %v398
    %v435 = vunpack.c.l.b16 %v399
    %v436 = vunpack.c.l.b16 %v400
    %v437 = vunpack.c.l.b16 %v401
    %v438 = vunpack.c.l.b16 %v402
    %v439 = vunpack.c.l.b16 %v403
    %v440 = vunpack.c.l.b16 %v404
    %v441 = vunpack.c.l.b16 %v405
    %v442 = vunpack.c.l.b16 %v406
    %v443 = vunpack.c.l.b16 %v407
    %v444 = vunpack.c.l.b16 %v408
    %v445 = vunpack.c.l.b16 %v409
    %v446 = vunpack.c.l.b16 %v410
    %v447 = vunpack.c.l.b16 %v411
    %v448 = vpack.c.b16 %v433, %v432
    %v449 = vpack.c.b16 %v435, %v434
    %v450 = vpack.c.b16 %v437, %v436
    %v451 = vpack.c.b16 %v439, %v438
    %v452 = vpack.c.b16 %v441, %v440
    %v453 = vpack.c.b16 %v443, %v442
    %v454 = vpack.c.b16 %v445, %v444
    %v455 = vpack.c.b16 %v447, %v446
    %464 = vmatpush.bf16.msra.mxu0 %v455
    %465 = vmatpush.bf16.msra.mxu0 %v454
    %466 = vmatpush.bf16.msra.mxu0 %v453
    %467 = vmatpush.bf16.msra.mxu0 %v452
    %468 = vmatpush.bf16.msra.mxu0 %v451
    %469 = vmatpush.bf16.msra.mxu0 %v450
    %470 = vmatpush.bf16.msra.mxu0 %v449
    %471 = vmatpush.bf16.msra.mxu0 %v448
    %472 = vmatmul.bf16.gmra.mxu0 %v395
    %v473 = vpop.f32.mrf.mxu0
    %v474 = vadd.f32 %v414, %v473
    %v475 = vpop.f32.mrf.mxu0
    %v476 = vadd.f32 %v414, %v475
    %477 = vdwg.mxu0
    %vm478 = vcmp.gt.f32.partialorder %v474, 0.0
    %vm479 = vcmp.gt.f32.partialorder %v476, 0.0
    %v480 = vmul.f32 %v474, 0.2
    %v481 = vmul.f32 %v476, 0.2
    %v482 = vsel %vm478, %v474, %v480
    %v483 = vsel %vm479, %v476, %v481
    %v484 = vpack.c.bf16 %v483, %v482
    %v485 = vld [vmem:[#allocation11] sm:$0xf]
    %v486 = vld [vmem:[#allocation11 + $0x4] sm:$0xf]
    %v487 = vld [vmem:[#allocation11 + $0x8] sm:$0xf]
    %v488 = vld [vmem:[#allocation11 + $0xc] sm:$0xf]
    %v489 = vld [vmem:[#allocation11 + $0x10] sm:$0xf]
    %v490 = vld [vmem:[#allocation11 + $0x14] sm:$0xf]
    %v491 = vld [vmem:[#allocation11 + $0x18] sm:$0xf]
    %v492 = vld [vmem:[#allocation11 + $0x1c] sm:$0xf]
    %v493 = vld [vmem:[#allocation11 + $0x20] sm:$0xf]
    %v494 = vld [vmem:[#allocation11 + $0x24] sm:$0xf]
    %v495 = vld [vmem:[#allocation11 + $0x28] sm:$0xf]
    %v496 = vld [vmem:[#allocation11 + $0x2c] sm:$0xf]
    %v497 = vld [vmem:[#allocation11 + $0x30] sm:$0xf]
    %v498 = vld [vmem:[#allocation11 + $0x34] sm:$0xf]
    %v499 = vld [vmem:[#allocation11 + $0x38] sm:$0xf]
    %v500 = vld [vmem:[#allocation11 + $0x3c] sm:$0xf]
    %v501 = vld [vmem:[%s8] sm:$0x1]
    %v503 = vperm.slane %v501, 0
    %v521 = vunpack.c.l.b16 %v485
    %v522 = vunpack.c.l.b16 %v486
    %v523 = vunpack.c.l.b16 %v487
    %v524 = vunpack.c.l.b16 %v488
    %v525 = vunpack.c.l.b16 %v489
    %v526 = vunpack.c.l.b16 %v490
    %v527 = vunpack.c.l.b16 %v491
    %v528 = vunpack.c.l.b16 %v492
    %v529 = vunpack.c.l.b16 %v493
    %v530 = vunpack.c.l.b16 %v494
    %v531 = vunpack.c.l.b16 %v495
    %v532 = vunpack.c.l.b16 %v496
    %v533 = vunpack.c.l.b16 %v497
    %v534 = vunpack.c.l.b16 %v498
    %v535 = vunpack.c.l.b16 %v499
    %v536 = vunpack.c.l.b16 %v500
    %v537 = vpack.c.b16 %v522, %v521
    %v538 = vpack.c.b16 %v524, %v523
    %v539 = vpack.c.b16 %v526, %v525
    %v540 = vpack.c.b16 %v528, %v527
    %v541 = vpack.c.b16 %v530, %v529
    %v542 = vpack.c.b16 %v532, %v531
    %v543 = vpack.c.b16 %v534, %v533
    %v544 = vpack.c.b16 %v536, %v535
    %553 = vmatpush.bf16.msra.mxu0 %v544
    %554 = vmatpush.bf16.msra.mxu0 %v543
    %555 = vmatpush.bf16.msra.mxu0 %v542
    %556 = vmatpush.bf16.msra.mxu0 %v541
    %557 = vmatpush.bf16.msra.mxu0 %v540
    %558 = vmatpush.bf16.msra.mxu0 %v539
    %559 = vmatpush.bf16.msra.mxu0 %v538
    %560 = vmatpush.bf16.msra.mxu0 %v537
    %561 = vmatmul.bf16.gmra.mxu0 %v484
    %v562 = vpop.f32.mrf.mxu0
    %v563 = vadd.f32 %v503, %v562
    %v564 = vpop.f32.mrf.mxu0
    %v565 = vadd.f32 %v503, %v564
    %566 = vdwg.mxu0
    %v567 = vxor.u32 %v563, 2147483648
    %v568 = vxor.u32 %v565, 2147483648
    %v569 = vmul.f32 %v567, 1.442695
    %v570 = vpow.pop %v569
    %v571 = vmul.f32 %v568, 1.442695
    %v572 = vpow.pop %v571
    %v573 = vadd.f32 %v570, 1.0
    %v574 = vadd.f32 %v572, 1.0
    %v575 = vrcp.pop %v573
    %v576 = vmul.f32 %v573, %v575
    %v577 = vsub.f32 1.0, %v576
    %v578 = vmul.f32 %v575, %v577
    %v579 = vadd.f32 %v575, %v578
    %vm580 = vweird.f32 %v573
    %vm581 = vweird.f32 %v575
    %vm582 = vmor %vm580, %vm581
    %v583 = vsel %vm582, %v575, %v579
    %v584 = vand.u32 2147483647, %v573
    %vm585 = vcmp.eq.f32.partialorder %v584, 8.507059e+37
    %v586 = vand.u32 %v573, 2147483648
    %v587 = vor.u32 1.1754944e-38, %v586
    %v588 = vsel %vm585, %v587, %v583
    %v589 = vmul.f32 1.0, %v588
    %v590 = vrcp.pop %v574
    %v591 = vmul.f32 %v574, %v590
    %v592 = vsub.f32 1.0, %v591
    %v593 = vmul.f32 %v590, %v592
    %v594 = vadd.f32 %v590, %v593
    %vm595 = vweird.f32 %v574
    %vm596 = vweird.f32 %v590
    %vm597 = vmor %vm595, %vm596
    %v598 = vsel %vm597, %v590, %v594
    %v599 = vand.u32 2147483647, %v574
    %vm600 = vcmp.eq.f32.partialorder %v599, 8.507059e+37
    %v601 = vand.u32 %v574, 2147483648
    %v602 = vor.u32 1.1754944e-38, %v601
    %v603 = vsel %vm600, %v602, %v598
    %v604 = vmul.f32 1.0, %v603
    %v605 = vpack.c.bf16 %v589, %v589
    %v606 = vpack.c.bf16 %v604, %v604
    %607 = vst [vmem:[#allocation13] sm:$0xf] %v605
    %608 = vst [vmem:[#allocation13 + $0x4] sm:$0xf] %v606
    // Predicated region
    $region62: #{tpu_custom_call.1} parent=1 // pred_check
      _
    $region63: #{tpu_custom_call.1} parent=1 // pred_check_branch
      %610 = sbr.rel (0) target = $region65
    $region64: #{tpu_custom_call.1} parent=1 // pred_region
      %612 = vsyncadd [#allocation4], 64
      %s613 = sshll.u32 [#allocation13], 4
      %s614 = int_to_ptr.vmem [resolvable:$true] %s613
      %s615 = sshll.u32 %s9, 4
      %s616 = int_to_ptr.hbm [resolvable:$true] %s615
      %621 = dma.vmem_to_hbm [thread:$0]  %s614, 64, %s616, [#allocation4], 64, 64, 4
    $region65: #{tpu_custom_call.1} parent=1 // pred_fallthru
      _
    // Predicated region
    $region66: #{tpu_custom_call.1} parent=1 // pred_check
      _
    $region67: #{tpu_custom_call.1} parent=1 // pred_check_branch
      %623 = sbr.rel (0) target = $region69
    $region68: #{tpu_custom_call.1} parent=1 // pred_region
      %625 = dma.done [#allocation4], 128
    $region69: #{tpu_custom_call.1} parent=1 // pred_fallthru
      _
    %626 = vsyncpa [#allocation3], 1
    %627 = vsyncpa [#allocation6], 1
    %628 = vsyncpa [#allocation9], 1
    %629 = vsyncpa [#allocation12], 1
    %630 = vsyncpa [#allocation4], 1

</llo_original>
